<compile_context>
chip_gen: v7x
topology: tpu7x:2x2x1
jax: 0.10.0
libtpu: 0.0.40
codegen_flags: <defaults>
</compile_context>

<pallas_src>
import functools

import jax
import jax.numpy as jnp
from jax.experimental import pallas as pl
from jax.experimental.pallas import tpu as pltpu


# ----------------------------- Pallas kernel ------------------------------

def _mlp_fused_kernel(x_ref, w1_ref, b1_ref, w2_ref, b2_ref, o_ref):
    """One batch tile: o = relu(x @ W1 + b1) @ W2 + b2 (fused, f32 accumulate)."""
    # bf16 x bf16 matmul, f32 accumulation on the MXU.
    h = jnp.dot(x_ref[...], w1_ref[...], preferred_element_type=jnp.float32)
    # Bias + ReLU on the f32 accumulator (VPU).
    h = jnp.maximum(h + b1_ref[...], 0.0)                       # (tm, hidden) f32
    y = jnp.dot(h.astype(w2_ref.dtype), w2_ref[...],
                preferred_element_type=jnp.float32)             # (tm, out) f32
    o_ref[...] = (y + b2_ref[...]).astype(o_ref.dtype)


def _round_up(x, m):
    return ((x + m - 1) // m) * m


def mlp_forward(params, feats, *, tile_m=1024):
    """feats: (B, in_size) -> (B, out_size), matching the PyTorch MLP.forward."""
    B, in_size = feats.shape
    hidden = params["fc1_w"].shape[0]        # in_size // 4
    out_size = params["fc2_w"].shape[0]

    # Feed the MXU in bf16; biases stay f32 (added to the f32 accumulator).
    x = feats.astype(jnp.bfloat16)
    # Torch stores Linear weights as (out, in); present them (in, out) for the MXU.
    w1 = params["fc1_w"].T.astype(jnp.bfloat16)                 # (in_size, hidden)
    b1 = params["fc1_b"].reshape(1, hidden).astype(jnp.float32)
    w2 = params["fc2_w"].T.astype(jnp.bfloat16)                 # (hidden, out_size)
    b2 = params["fc2_b"].reshape(1, out_size).astype(jnp.float32)

    # ---- batch-tile (M) selection ----
    # VMEM budget: cap the bf16 x tile at ~4 MiB per pipeline buffer so
    # 2x double-buffered x + resident weights + f32 hidden scratch stays well
    # under v5e's 16 MiB default scoped VMEM and v7x's 64 MiB physical VMEM.
    bytes_per_row = in_size * 2                                  # bf16
    tm_vmem_cap = max(128, ((4 * 1024 * 1024) // bytes_per_row) // 128 * 128)
    tm = min(tile_m, tm_vmem_cap)
    # Keep >= 2 grid blocks when the batch allows, so v7x's second TensorCore
    # gets work via the "parallel" grid axis (no effect on v5e/v6e).
    if B >= 2 * 128:
        tm = min(tm, _round_up(pl.cdiv(B, 2), 128))
    if tm >= B:
        tm = B                        # single full-extent block (legal for any B)
    elif tm % 8 != 0:
        tm = max(8, (tm // 8) * 8)    # sublane alignment when tiling the batch
    n_blocks = pl.cdiv(B, tm)         # ragged final block: masked OOB writes

    cost = pl.CostEstimate(
        flops=2 * B * in_size * hidden + 2 * B * hidden * out_size,
        transcendentals=0,
        bytes_accessed=(B * in_size * 2                      # x (bf16)
                        + in_size * hidden * 2               # W1 (bf16)
                        + hidden * out_size * 2              # W2 (bf16)
                        + (hidden + out_size) * 4            # biases (f32)
                        + B * out_size * 4),                 # output (f32)
    )

    out = pl.pallas_call(
        _mlp_fused_kernel,
        out_shape=jax.ShapeDtypeStruct((B, out_size), jnp.float32),
        grid=(n_blocks,),
        in_specs=[
            pl.BlockSpec((tm, in_size), lambda i: (i, 0)),          # x tile
            pl.BlockSpec((in_size, hidden), lambda i: (0, 0)),      # W1 (resident)
            pl.BlockSpec((1, hidden), lambda i: (0, 0)),            # b1 (resident)
            pl.BlockSpec((hidden, out_size), lambda i: (0, 0)),     # W2 (resident)
            pl.BlockSpec((1, out_size), lambda i: (0, 0)),          # b2 (resident)
        ],
        out_specs=pl.BlockSpec((tm, out_size), lambda i: (i, 0)),
        compiler_params=pltpu.CompilerParams(
            dimension_semantics=("parallel",),
            vmem_limit_bytes=32 * 1024 * 1024),
        cost_estimate=cost,
    )(x, w1, b1, w2, b2)
    return out


# ------------------------ deterministic param init ------------------------

def init_params(key, in_size, out_size=1):
    hidden = int(in_size / 2 / 2)

    def lin(kk, out_f, in_f):
        lim = 1.0 / float(in_f) ** 0.5
        w = jax.random.uniform(kk[0], (out_f, in_f), jnp.float32, -lim, lim)
        b = jax.random.uniform(kk[1], (out_f,), jnp.float32, -lim, lim)
        return w, b

    keys = jax.random.split(key, 4)
    p = {}
    p["fc1_w"], p["fc1_b"] = lin(keys[0:2], hidden, in_size)
    p["fc2_w"], p["fc2_b"] = lin(keys[2:4], out_size, hidden)
    return p


# --------------------------- pure-JAX reference ----------------------------

def reference_forward(params, feats):
    h = jax.nn.relu(feats @ params["fc1_w"].T + params["fc1_b"])
    return h @ params["fc2_w"].T + params["fc2_b"]


# --------------------------------- main ------------------------------------

if __name__ == "__main__":
    key = jax.random.PRNGKey(0)
    pkey, xkey = jax.random.split(key)

    # in_size=512 -> hidden=128 (128-aligned); batch=512 -> 2 parallel grid
    # blocks of tm=256 (feeds both TensorCores on v7x; single TC elsewhere).
    IN_SIZE, OUT_SIZE, BATCH = 512, 1, 512
    params = init_params(pkey, IN_SIZE, OUT_SIZE)
    feats = jax.random.normal(xkey, (BATCH, IN_SIZE), jnp.float32)

    fwd = jax.jit(functools.partial(mlp_forward, tile_m=1024))
    y = jax.block_until_ready(fwd(params, feats))

    y_ref = reference_forward(params, feats)
    assert y.shape == (BATCH, OUT_SIZE)
    # bf16 inputs to the MXU -> relaxed tolerance vs. the f32 reference.
    assert jnp.allclose(y, y_ref, atol=5e-2, rtol=5e-2), (
        float(jnp.max(jnp.abs(y - y_ref))))

    # Non-multiple-of-tile batch: exercises the ragged final grid block
    # (masked OOB writes) with no host-side padding.
    y_odd = jax.block_until_ready(fwd(params, feats[:390]))
    assert y_odd.shape == (390, OUT_SIZE)
    assert jnp.allclose(y_odd, y_ref[:390], atol=5e-2, rtol=5e-2)

    print("KERNEL_OK")
</pallas_src>

<mosaic_0001>
module attributes {stable_mosaic.version = 11 : i64} {
  func.func @_mlp_fused_kernel(%arg0: i32, %arg1: memref<256x512xbf16, #tpu.memory_space<vmem>>, %arg2: memref<512x128xbf16, #tpu.memory_space<vmem>>, %arg3: memref<1x128xf32, #tpu.memory_space<vmem>>, %arg4: memref<128x1xbf16, #tpu.memory_space<vmem>>, %arg5: memref<1x1xf32, #tpu.memory_space<vmem>>, %arg6: memref<256x1xf32, #tpu.memory_space<vmem>>) attributes {dimension_semantics = [#tpu.dimension_semantics<parallel>], iteration_bounds = array<i64: 2>, scalar_prefetch = 0 : i64, scratch_operands = 0 : i64, tpu.core_type = #tpu.core_type<tc>, window_params = [{transform_indices = @transform_0, window_bounds = array<i64: 256, 512>}, {pipeline_mode = #tpu.pipeline_mode<synchronous>, transform_indices = @transform_1, window_bounds = array<i64: 512, 128>}, {pipeline_mode = #tpu.pipeline_mode<synchronous>, transform_indices = @transform_2, window_bounds = array<i64: 1, 128>}, {pipeline_mode = #tpu.pipeline_mode<synchronous>, transform_indices = @transform_3, window_bounds = array<i64: 128, 1>}, {pipeline_mode = #tpu.pipeline_mode<synchronous>, transform_indices = @transform_4, window_bounds = array<i64: 1, 1>}, {transform_indices = @transform_5, window_bounds = array<i64: 256, 1>}]} {
    %c0 = arith.constant 0 : index
    %c0_0 = arith.constant 0 : index
    %0 = vector.load %arg1[%c0, %c0_0] : memref<256x512xbf16, #tpu.memory_space<vmem>>, vector<256x512xbf16>
    %c0_1 = arith.constant 0 : index
    %c0_2 = arith.constant 0 : index
    %1 = vector.load %arg2[%c0_1, %c0_2] : memref<512x128xbf16, #tpu.memory_space<vmem>>, vector<512x128xbf16>
    %cst = arith.constant dense<0.000000e+00> : vector<256x128xf32>
    %2 = tpu.matmul %0, %1, %cst {dimension_numbers = #tpu.dot_dimension_numbers<[1], [0], [0], [1], [0, 0, 1, 1], [], []>} : vector<256x512xbf16>, vector<512x128xbf16>, vector<256x128xf32> -> vector<256x128xf32>
    %c0_3 = arith.constant 0 : index
    %c0_4 = arith.constant 0 : index
    %3 = vector.load %arg3[%c0_3, %c0_4] : memref<1x128xf32, #tpu.memory_space<vmem>>, vector<1x128xf32>
    %4 = vector.broadcast %3 : vector<1x128xf32> to vector<256x128xf32>
    %5 = arith.addf %2, %4 : vector<256x128xf32>
    %cst_5 = arith.constant 0.000000e+00 : f32
    %6 = vector.broadcast %cst_5 : f32 to vector<256x128xf32>
    %7 = arith.maximumf %5, %6 : vector<256x128xf32>
    %8 = arith.truncf %7 : vector<256x128xf32> to vector<256x128xbf16>
    %c0_6 = arith.constant 0 : index
    %c0_7 = arith.constant 0 : index
    %9 = vector.load %arg4[%c0_6, %c0_7] : memref<128x1xbf16, #tpu.memory_space<vmem>>, vector<128x1xbf16>
    %cst_8 = arith.constant dense<0.000000e+00> : vector<256x1xf32>
    %10 = tpu.matmul %8, %9, %cst_8 {dimension_numbers = #tpu.dot_dimension_numbers<[1], [0], [0], [1], [0, 0, 1, 1], [], []>} : vector<256x128xbf16>, vector<128x1xbf16>, vector<256x1xf32> -> vector<256x1xf32>
    %c0_9 = arith.constant 0 : index
    %c0_10 = arith.constant 0 : index
    %11 = vector.load %arg5[%c0_9, %c0_10] : memref<1x1xf32, #tpu.memory_space<vmem>>, vector<1x1xf32>
    %12 = vector.broadcast %11 : vector<1x1xf32> to vector<256x1xf32>
    %13 = arith.addf %10, %12 : vector<256x1xf32>
    %c0_11 = arith.constant 0 : index
    %c0_12 = arith.constant 0 : index
    %14 = vector.load %arg6[%c0_11, %c0_12] : memref<256x1xf32, #tpu.memory_space<vmem>>, vector<256x1xf32>
    tpu.vector_store %arg6[%c0_11, %c0_12], %13 {strides = array<i32>} : memref<256x1xf32, #tpu.memory_space<vmem>>, vector<256x1xf32>,
    return
  }
  func.func @transform_0(%arg0: i32) -> (i32, i32) {
    %c0_i32 = arith.constant 0 : i32
    %c0_i32_0 = arith.constant 0 : i32
    return %arg0, %c0_i32 : i32, i32
  }
  func.func @transform_1(%arg0: i32) -> (i32, i32) {
    %c0_i32 = arith.constant 0 : i32
    %c0_i32_0 = arith.constant 0 : i32
    %c0_i32_1 = arith.constant 0 : i32
    return %c0_i32, %c0_i32_0 : i32, i32
  }
  func.func @transform_2(%arg0: i32) -> (i32, i32) {
    %c0_i32 = arith.constant 0 : i32
    %c0_i32_0 = arith.constant 0 : i32
    %c0_i32_1 = arith.constant 0 : i32
    return %c0_i32, %c0_i32_0 : i32, i32
  }
  func.func @transform_3(%arg0: i32) -> (i32, i32) {
    %c0_i32 = arith.constant 0 : i32
    %c0_i32_0 = arith.constant 0 : i32
    %c0_i32_1 = arith.constant 0 : i32
    return %c0_i32, %c0_i32_0 : i32, i32
  }
  func.func @transform_4(%arg0: i32) -> (i32, i32) {
    %c0_i32 = arith.constant 0 : i32
    %c0_i32_0 = arith.constant 0 : i32
    %c0_i32_1 = arith.constant 0 : i32
    return %c0_i32, %c0_i32_0 : i32, i32
  }
  func.func @transform_5(%arg0: i32) -> (i32, i32) {
    %c0_i32 = arith.constant 0 : i32
    %c0_i32_0 = arith.constant 0 : i32
    return %arg0, %c0_i32 : i32, i32
  }
}

</mosaic_0001>

<llo_original>
// kernel: mlp_forward.1
$region0: #{mlp_forward.1}
  #allocation0 [shape = 'u32[]', space=smem, size = 0x4, offset = 0x4, fixed_abs, tag = 'smem constant byte address 0x4 - core index']
  #allocation1 [shape = 'u32[144,128]{1,0:T(1,128)}', space=vmem, size = 0x12000, scoped, tag = 'internal scratch']
  #allocation2 [shape = 'f32[1,1]{1,0:T(1,128)S(1)}', space=vmem, size = 0x200, scoped, tag = 'scoped memory for mlp_forward.1']
  %s0 = inlined_call_operand.vmem [shape: bf16[512,512], index: 0, kind: input, shape index: {}]
  %s1 = inlined_call_operand.vmem [shape: bf16[512,128], index: 1, kind: input, shape index: {}]
  %s2 = inlined_call_operand.vmem [shape: f32[1,128], index: 2, kind: input, shape index: {}]
  %s3 = inlined_call_operand.vmem [shape: bf16[128,1], index: 3, kind: input, shape index: {}]
  %s4 = inlined_call_operand.<no memory space> [shape: f32[1,1], index: 4, kind: input, shape index: {}]
  %s5 = inlined_call_operand.vmem [shape: f32[512,1], index: 5, kind: output, shape index: {}]
  %s6 = sld [smem:[#allocation0]]
  $region53: #{mlp_forward.1} parent=0
    _
  %s8 = ssub.s32 1, %s6
  %s9 = scalar_select 0, %s8, %s6
  %v10 = vstv %s4
  %11 = vst [vmem:[#allocation2] sm:$0x1] %v10
  loop: start=0, step=1, limit=4
  $region2: #{mlp_forward.1} parent=0 // loop_pre_header
    _
  $region3: #{mlp_forward.1} parent=0 // loop_header
    %s13 = sphi 0, %s17
    %p14 = scmp.ge.s32.totalorder %s13, 4
    %s23 = sphi 0, %s25
    %s26 = sphi 0, %s23
    %s27 = sphi 0, %s26
    %s43 = sphi 0, %s27
    %s47 = sphi 0, %s47
    %s49 = sphi 0, %s47
    %s50 = sphi 0, %s49
    %s64 = sphi 0, %s50
    %s68 = sphi 0, %s68
    %s70 = sphi 0, %s68
    %s71 = sphi 0, %s70
    %s85 = sphi 0, %s71
    %s89 = sphi 0, %s89
    %s91 = sphi 0, %s89
    %s92 = sphi 0, %s91
    %s106 = sphi 0, %s92
    %s110 = sphi 0, %s110
    %s112 = sphi 0, %s110
    %s113 = sphi 0, %s112
    %s127 = sphi 0, %s113
    %s133 = sphi 0, %s135
    %s136 = sphi 0, %s133
    %s137 = sphi 0, %s136
    %s153 = sphi 0, %s137
  $region4: #{mlp_forward.1} parent=0 // loop_header_branch
    %16 = sbr.rel (%p14) target = $region8
  $region5: #{mlp_forward.1} parent=0 // loop_body
    %s18 = ssub.s32 %s13, 1
    %s19 = ssub.s32 %s13, 2
    %s20 = sadd.s32 %s13, 1
    %s21 = ssub.s32 %s13, %s20
    %p22 = scmp.eq.s32.totalorder %s21, 0
    %s24 = sadd.s32 %s23, 1
    %s25 = scalar_select %p22, %s23, %s24
    %p28 = pneg %p22
    %p29 = scmp.eq.s32.totalorder %s13, 1
    %p30 = por %p28, %p29
    %p31 = scmp.ne.s32.totalorder %s23, %s26
    %p32 = scmp.eq.s32.totalorder %s13, 0
    %p33 = por %p31, %p32
    %p34 = scmp.ne.s32.totalorder %s23, %s26
    %p35 = scmp.eq.s32.totalorder %s18, 1
    %p36 = por %p34, %p35
    %p37 = scmp.ne.s32.totalorder %s26, %s27
    %p38 = scmp.eq.s32.totalorder %s18, 0
    %p39 = por %p37, %p38
    %p40 = scmp.ne.s32.totalorder %s26, %s27
    %p41 = scmp.eq.s32.totalorder %s19, 1
    %p42 = por %p40, %p41
    %p44 = scmp.ne.s32.totalorder %s27, %s43
    %p45 = scmp.eq.s32.totalorder %s19, 0
    %p46 = por %p44, %p45
    %s48 = sadd.s32 %s47, 1
    %p51 = scmp.eq.s32.totalorder %s13, 1
    %p52 = scmp.ne.s32.totalorder %s47, %s49
    %p53 = scmp.eq.s32.totalorder %s13, 0
    %p54 = por %p52, %p53
    %p55 = scmp.ne.s32.totalorder %s47, %s49
    %p56 = scmp.eq.s32.totalorder %s18, 1
    %p57 = por %p55, %p56
    %p58 = scmp.ne.s32.totalorder %s49, %s50
    %p59 = scmp.eq.s32.totalorder %s18, 0
    %p60 = por %p58, %p59
    %p61 = scmp.ne.s32.totalorder %s49, %s50
    %p62 = scmp.eq.s32.totalorder %s19, 1
    %p63 = por %p61, %p62
    %p65 = scmp.ne.s32.totalorder %s50, %s64
    %p66 = scmp.eq.s32.totalorder %s19, 0
    %p67 = por %p65, %p66
    %s69 = sadd.s32 %s68, 1
    %p72 = scmp.eq.s32.totalorder %s13, 1
    %p73 = scmp.ne.s32.totalorder %s68, %s70
    %p74 = scmp.eq.s32.totalorder %s13, 0
    %p75 = por %p73, %p74
    %p76 = scmp.ne.s32.totalorder %s68, %s70
    %p77 = scmp.eq.s32.totalorder %s18, 1
    %p78 = por %p76, %p77
    %p79 = scmp.ne.s32.totalorder %s70, %s71
    %p80 = scmp.eq.s32.totalorder %s18, 0
    %p81 = por %p79, %p80
    %p82 = scmp.ne.s32.totalorder %s70, %s71
    %p83 = scmp.eq.s32.totalorder %s19, 1
    %p84 = por %p82, %p83
    %p86 = scmp.ne.s32.totalorder %s71, %s85
    %p87 = scmp.eq.s32.totalorder %s19, 0
    %p88 = por %p86, %p87
    %s90 = sadd.s32 %s89, 1
    %p93 = scmp.eq.s32.totalorder %s13, 1
    %p94 = scmp.ne.s32.totalorder %s89, %s91
    %p95 = scmp.eq.s32.totalorder %s13, 0
    %p96 = por %p94, %p95
    %p97 = scmp.ne.s32.totalorder %s89, %s91
    %p98 = scmp.eq.s32.totalorder %s18, 1
    %p99 = por %p97, %p98
    %p100 = scmp.ne.s32.totalorder %s91, %s92
    %p101 = scmp.eq.s32.totalorder %s18, 0
    %p102 = por %p100, %p101
    %p103 = scmp.ne.s32.totalorder %s91, %s92
    %p104 = scmp.eq.s32.totalorder %s19, 1
    %p105 = por %p103, %p104
    %p107 = scmp.ne.s32.totalorder %s92, %s106
    %p108 = scmp.eq.s32.totalorder %s19, 0
    %p109 = por %p107, %p108
    %s111 = sadd.s32 %s110, 1
    %p114 = scmp.eq.s32.totalorder %s13, 1
    %p115 = scmp.ne.s32.totalorder %s110, %s112
    %p116 = scmp.eq.s32.totalorder %s13, 0
    %p117 = por %p115, %p116
    %p118 = scmp.ne.s32.totalorder %s110, %s112
    %p119 = scmp.eq.s32.totalorder %s18, 1
    %p120 = por %p118, %p119
    %p121 = scmp.ne.s32.totalorder %s112, %s113
    %p122 = scmp.eq.s32.totalorder %s18, 0
    %p123 = por %p121, %p122
    %p124 = scmp.ne.s32.totalorder %s112, %s113
    %p125 = scmp.eq.s32.totalorder %s19, 1
    %p126 = por %p124, %p125
    %p128 = scmp.ne.s32.totalorder %s113, %s127
    %p129 = scmp.eq.s32.totalorder %s19, 0
    %p130 = por %p128, %p129
    %s131 = ssub.s32 %s13, %s20
    %p132 = scmp.eq.s32.totalorder %s131, 0
    %s134 = sadd.s32 %s133, 1
    %s135 = scalar_select %p132, %s133, %s134
    %p138 = pneg %p132
    %p139 = scmp.eq.s32.totalorder %s13, 1
    %p140 = por %p138, %p139
    %p141 = scmp.ne.s32.totalorder %s133, %s136
    %p142 = scmp.eq.s32.totalorder %s13, 0
    %p143 = por %p141, %p142
    %p144 = scmp.ne.s32.totalorder %s133, %s136
    %p145 = scmp.eq.s32.totalorder %s18, 1
    %p146 = por %p144, %p145
    %p147 = scmp.ne.s32.totalorder %s136, %s137
    %p148 = scmp.eq.s32.totalorder %s18, 0
    %p149 = por %p147, %p148
    %p150 = scmp.ne.s32.totalorder %s136, %s137
    %p151 = scmp.eq.s32.totalorder %s19, 1
    %p152 = por %p150, %p151
    %p154 = scmp.ne.s32.totalorder %s137, %s153
    %p155 = scmp.eq.s32.totalorder %s19, 0
    %p156 = por %p154, %p155
    %p157 = scmp.le.s32.totalorder 1, %s13
    %p158 = scmp.lt.s32.totalorder %s13, 3
    %p159 = pnand %p157, %p158
    %p160 = pneg %p159
    // Predicated region
    $region9: #{mlp_forward.1} parent=5 // pred_check
      _
    $region10: #{mlp_forward.1} parent=5 // pred_check_branch
      %162 = sbr.rel (%p159) target = $region12
    $region11: #{mlp_forward.1} parent=5 // pred_region
      %s163 = ssub.s32 %s13, 1
      // Predicated region
      $region13: #{mlp_forward.1} parent=11 // pred_check
        %p164 = pneg %p60
      $region14: #{mlp_forward.1} parent=11 // pred_check_branch
        %166 = sbr.rel (%p164) target = $region16
      $region15: #{mlp_forward.1} parent=11 // pred_region
        _
      $region16: #{mlp_forward.1} parent=11 // pred_fallthru
        _
      // Predicated region
      $region17: #{mlp_forward.1} parent=11 // pred_check
        %p167 = pneg %p81
      $region18: #{mlp_forward.1} parent=11 // pred_check_branch
        %169 = sbr.rel (%p167) target = $region20
      $region19: #{mlp_forward.1} parent=11 // pred_region
        _
      $region20: #{mlp_forward.1} parent=11 // pred_fallthru
        _
      // Predicated region
      $region21: #{mlp_forward.1} parent=11 // pred_check
        %p170 = pneg %p102
      $region22: #{mlp_forward.1} parent=11 // pred_check_branch
        %172 = sbr.rel (%p170) target = $region24
      $region23: #{mlp_forward.1} parent=11 // pred_region
        _
      $region24: #{mlp_forward.1} parent=11 // pred_fallthru
        _
      // Predicated region
      $region25: #{mlp_forward.1} parent=11 // pred_check
        %p173 = pneg %p123
      $region26: #{mlp_forward.1} parent=11 // pred_check_branch
        %175 = sbr.rel (%p173) target = $region28
      $region27: #{mlp_forward.1} parent=11 // pred_region
        _
      $region28: #{mlp_forward.1} parent=11 // pred_fallthru
        _
    $region12: #{mlp_forward.1} parent=5 // pred_fallthru
      _
    %p176 = scmp.lt.s32.totalorder %s13, 2
    // Predicated region
    $region29: #{mlp_forward.1} parent=5 // pred_check
      %p177 = pneg %p176
    $region30: #{mlp_forward.1} parent=5 // pred_check_branch
      %179 = sbr.rel (%p177) target = $region32
    $region31: #{mlp_forward.1} parent=5 // pred_region
      // Predicated region
      $region33: #{mlp_forward.1} parent=31 // pred_check
        %p180 = pneg %p33
      $region34: #{mlp_forward.1} parent=31 // pred_check_branch
        %182 = sbr.rel (%p180) target = $region36
      $region35: #{mlp_forward.1} parent=31 // pred_region
        %s183 = smul.u32 32, %s13
        %p184 = scmp.lt.s32.totalorder %s183, 63
        %s185 = scalar_select %p184, %s183, 63
        %s186 = smul.addr %s185, 4
        %s187 = smul.addr %s186, 4
        %s188 = scalar_lea.vmem %s0, %s187
        %s189 = smul.u32 32, %s13
      $region36: #{mlp_forward.1} parent=31 // pred_fallthru
        _
    $region32: #{mlp_forward.1} parent=5 // pred_fallthru
      _
    %p190 = scmp.le.s32.totalorder 1, %s13
    %p191 = scmp.lt.s32.totalorder %s13, 3
    %p192 = pnand %p190, %p191
    %p193 = pneg %p192
    // Predicated region
    $region37: #{mlp_forward.1} parent=5 // pred_check
      _
    $region38: #{mlp_forward.1} parent=5 // pred_check_branch
      %195 = sbr.rel (%p192) target = $region40
    $region39: #{mlp_forward.1} parent=5 // pred_region
      %s196 = ssub.s32 %s13, 1
      %s197 = smul.u32 32, %s18
      %p198 = scmp.lt.s32.totalorder %s197, 63
      %s199 = scalar_select %p198, %s197, 63
      %s200 = smul.addr %s199, 4
      %s201 = smul.addr %s200, 4
      %s202 = scalar_lea.vmem %s0, %s201
      %p203 = pneg %p39
      %p204 = pneg %p36
      %p205 = pneg %p60
      %p206 = pneg %p57
      %p207 = pneg %p81
      %p208 = pneg %p78
      %p209 = pneg %p102
      %p210 = pneg %p99
      %p211 = pneg %p123
      %p212 = pneg %p120
      %p213 = pneg %p149
      %p214 = pneg %p146
      %s215 = smul.u32 32, %s18
      %p216 = scmp.lt.s32.totalorder %s215, 63
      %s217 = scalar_select %p216, %s215, 63
      %s218 = smul.addr %s217, 8
      %s219 = scalar_lea.vmem %s5, %s218
      %s220 = smul.u32 32, %s18
      %p221 = scmp.lt.s32.totalorder %s220, 63
      %s222 = scalar_select %p221, %s220, 63
      %s223 = smul.addr %s222, 4
      %s224 = smul.addr %s223, 4
      %s225 = scalar_lea.vmem %s0, %s224
      %s226 = smul.u32 32, %s18
      %s227 = smul.u32 32, %s18
      %p228 = scmp.lt.s32.totalorder %s227, 63
      %s229 = scalar_select %p228, %s227, 63
      %s230 = smul.addr %s229, 8
      %s231 = scalar_lea.vmem %s5, %s230
      %s232 = smul.u32 32, %s18
      %v234 = vld [vmem:[%s225] sm:$0xff]
      %v235 = vld [vmem:[%s225 + $0x8] sm:$0xff]
      %v236 = vld [vmem:[%s225 + $0x10] sm:$0xff]
      %v237 = vld [vmem:[%s225 + $0x18] sm:$0xff]
      %v238 = vld [vmem:[%s225 + $0x20] sm:$0xff]
      %v239 = vld [vmem:[%s225 + $0x28] sm:$0xff]
      %v240 = vld [vmem:[%s225 + $0x30] sm:$0xff]
      %v241 = vld [vmem:[%s225 + $0x38] sm:$0xff]
      %v242 = vld [vmem:[%s225 + $0x40] sm:$0xff]
      %v243 = vld [vmem:[%s225 + $0x48] sm:$0xff]
      %v244 = vld [vmem:[%s225 + $0x50] sm:$0xff]
      %v245 = vld [vmem:[%s225 + $0x58] sm:$0xff]
      %v246 = vld [vmem:[%s225 + $0x60] sm:$0xff]
      %v247 = vld [vmem:[%s225 + $0x68] sm:$0xff]
      %v248 = vld [vmem:[%s225 + $0x70] sm:$0xff]
      %v249 = vld [vmem:[%s225 + $0x78] sm:$0xff]
      %v250 = vld [vmem:[%s225 + $0x80] sm:$0xff]
      %v251 = vld [vmem:[%s225 + $0x88] sm:$0xff]
      %v252 = vld [vmem:[%s225 + $0x90] sm:$0xff]
      %v253 = vld [vmem:[%s225 + $0x98] sm:$0xff]
      %v254 = vld [vmem:[%s225 + $0xa0] sm:$0xff]
      %v255 = vld [vmem:[%s225 + $0xa8] sm:$0xff]
      %v256 = vld [vmem:[%s225 + $0xb0] sm:$0xff]
      %v257 = vld [vmem:[%s225 + $0xb8] sm:$0xff]
      %v258 = vld [vmem:[%s225 + $0xc0] sm:$0xff]
      %v259 = vld [vmem:[%s225 + $0xc8] sm:$0xff]
      %v260 = vld [vmem:[%s225 + $0xd0] sm:$0xff]
      %v261 = vld [vmem:[%s225 + $0xd8] sm:$0xff]
      %v262 = vld [vmem:[%s225 + $0xe0] sm:$0xff]
      %v263 = vld [vmem:[%s225 + $0xe8] sm:$0xff]
      %v264 = vld [vmem:[%s225 + $0xf0] sm:$0xff]
      %v265 = vld [vmem:[%s225 + $0xf8] sm:$0xff]
      %v266 = vld [vmem:[%s225 + $0x100] sm:$0xff]
      %v267 = vld [vmem:[%s225 + $0x108] sm:$0xff]
      %v268 = vld [vmem:[%s225 + $0x110] sm:$0xff]
      %v269 = vld [vmem:[%s225 + $0x118] sm:$0xff]
      %v270 = vld [vmem:[%s225 + $0x120] sm:$0xff]
      %v271 = vld [vmem:[%s225 + $0x128] sm:$0xff]
      %v272 = vld [vmem:[%s225 + $0x130] sm:$0xff]
      %v273 = vld [vmem:[%s225 + $0x138] sm:$0xff]
      %v274 = vld [vmem:[%s225 + $0x140] sm:$0xff]
      %v275 = vld [vmem:[%s225 + $0x148] sm:$0xff]
      %v276 = vld [vmem:[%s225 + $0x150] sm:$0xff]
      %v277 = vld [vmem:[%s225 + $0x158] sm:$0xff]
      %v278 = vld [vmem:[%s225 + $0x160] sm:$0xff]
      %v279 = vld [vmem:[%s225 + $0x168] sm:$0xff]
      %v280 = vld [vmem:[%s225 + $0x170] sm:$0xff]
      %v281 = vld [vmem:[%s225 + $0x178] sm:$0xff]
      %v282 = vld [vmem:[%s225 + $0x180] sm:$0xff]
      %v283 = vld [vmem:[%s225 + $0x188] sm:$0xff]
      %v284 = vld [vmem:[%s225 + $0x190] sm:$0xff]
      %v285 = vld [vmem:[%s225 + $0x198] sm:$0xff]
      %v286 = vld [vmem:[%s225 + $0x1a0] sm:$0xff]
      %v287 = vld [vmem:[%s225 + $0x1a8] sm:$0xff]
      %v288 = vld [vmem:[%s225 + $0x1b0] sm:$0xff]
      %v289 = vld [vmem:[%s225 + $0x1b8] sm:$0xff]
      %v290 = vld [vmem:[%s225 + $0x1c0] sm:$0xff]
      %v291 = vld [vmem:[%s225 + $0x1c8] sm:$0xff]
      %v292 = vld [vmem:[%s225 + $0x1d0] sm:$0xff]
      %v293 = vld [vmem:[%s225 + $0x1d8] sm:$0xff]
      %v294 = vld [vmem:[%s225 + $0x1e0] sm:$0xff]
      %v295 = vld [vmem:[%s225 + $0x1e8] sm:$0xff]
      %v296 = vld [vmem:[%s225 + $0x1f0] sm:$0xff]
      %v297 = vld [vmem:[%s225 + $0x1f8] sm:$0xff]
      %v298 = vld [vmem:[%s1] sm:$0xf]
      %v299 = vld [vmem:[%s1 + $0x4] sm:$0xf]
      %v300 = vld [vmem:[%s1 + $0x8] sm:$0xf]
      %v301 = vld [vmem:[%s1 + $0xc] sm:$0xf]
      %v302 = vld [vmem:[%s1 + $0x10] sm:$0xf]
      %v303 = vld [vmem:[%s1 + $0x14] sm:$0xf]
      %v304 = vld [vmem:[%s1 + $0x18] sm:$0xf]
      %v305 = vld [vmem:[%s1 + $0x1c] sm:$0xf]
      %v306 = vld [vmem:[%s1 + $0x20] sm:$0xf]
      %v307 = vld [vmem:[%s1 + $0x24] sm:$0xf]
      %v308 = vld [vmem:[%s1 + $0x28] sm:$0xf]
      %v309 = vld [vmem:[%s1 + $0x2c] sm:$0xf]
      %v310 = vld [vmem:[%s1 + $0x30] sm:$0xf]
      %v311 = vld [vmem:[%s1 + $0x34] sm:$0xf]
      %v312 = vld [vmem:[%s1 + $0x38] sm:$0xf]
      %v313 = vld [vmem:[%s1 + $0x3c] sm:$0xf]
      %v314 = vld [vmem:[%s1 + $0x40] sm:$0xf]
      %v315 = vld [vmem:[%s1 + $0x44] sm:$0xf]
      %v316 = vld [vmem:[%s1 + $0x48] sm:$0xf]
      %v317 = vld [vmem:[%s1 + $0x4c] sm:$0xf]
      %v318 = vld [vmem:[%s1 + $0x50] sm:$0xf]
      %v319 = vld [vmem:[%s1 + $0x54] sm:$0xf]
      %v320 = vld [vmem:[%s1 + $0x58] sm:$0xf]
      %v321 = vld [vmem:[%s1 + $0x5c] sm:$0xf]
      %v322 = vld [vmem:[%s1 + $0x60] sm:$0xf]
      %v323 = vld [vmem:[%s1 + $0x64] sm:$0xf]
      %v324 = vld [vmem:[%s1 + $0x68] sm:$0xf]
      %v325 = vld [vmem:[%s1 + $0x6c] sm:$0xf]
      %v326 = vld [vmem:[%s1 + $0x70] sm:$0xf]
      %v327 = vld [vmem:[%s1 + $0x74] sm:$0xf]
      %v328 = vld [vmem:[%s1 + $0x78] sm:$0xf]
      %v329 = vld [vmem:[%s1 + $0x7c] sm:$0xf]
      %v330 = vld [vmem:[%s1 + $0x80] sm:$0xf]
      %v331 = vld [vmem:[%s1 + $0x84] sm:$0xf]
      %v332 = vld [vmem:[%s1 + $0x88] sm:$0xf]
      %v333 = vld [vmem:[%s1 + $0x8c] sm:$0xf]
      %v334 = vld [vmem:[%s1 + $0x90] sm:$0xf]
      %v335 = vld [vmem:[%s1 + $0x94] sm:$0xf]
      %v336 = vld [vmem:[%s1 + $0x98] sm:$0xf]
      %v337 = vld [vmem:[%s1 + $0x9c] sm:$0xf]
      %v338 = vld [vmem:[%s1 + $0xa0] sm:$0xf]
      %v339 = vld [vmem:[%s1 + $0xa4] sm:$0xf]
      %v340 = vld [vmem:[%s1 + $0xa8] sm:$0xf]
      %v341 = vld [vmem:[%s1 + $0xac] sm:$0xf]
      %v342 = vld [vmem:[%s1 + $0xb0] sm:$0xf]
      %v343 = vld [vmem:[%s1 + $0xb4] sm:$0xf]
      %v344 = vld [vmem:[%s1 + $0xb8] sm:$0xf]
      %v345 = vld [vmem:[%s1 + $0xbc] sm:$0xf]
      %v346 = vld [vmem:[%s1 + $0xc0] sm:$0xf]
      %v347 = vld [vmem:[%s1 + $0xc4] sm:$0xf]
      %v348 = vld [vmem:[%s1 + $0xc8] sm:$0xf]
      %v349 = vld [vmem:[%s1 + $0xcc] sm:$0xf]
      %v350 = vld [vmem:[%s1 + $0xd0] sm:$0xf]
      %v351 = vld [vmem:[%s1 + $0xd4] sm:$0xf]
      %v352 = vld [vmem:[%s1 + $0xd8] sm:$0xf]
      %v353 = vld [vmem:[%s1 + $0xdc] sm:$0xf]
      %v354 = vld [vmem:[%s1 + $0xe0] sm:$0xf]
      %v355 = vld [vmem:[%s1 + $0xe4] sm:$0xf]
      %v356 = vld [vmem:[%s1 + $0xe8] sm:$0xf]
      %v357 = vld [vmem:[%s1 + $0xec] sm:$0xf]
      %v358 = vld [vmem:[%s1 + $0xf0] sm:$0xf]
      %v359 = vld [vmem:[%s1 + $0xf4] sm:$0xf]
      %v360 = vld [vmem:[%s1 + $0xf8] sm:$0xf]
      %v361 = vld [vmem:[%s1 + $0xfc] sm:$0xf]
      %v362 = vld [vmem:[%s2] sm:$0x1]
      %v364 = vlaneseq
      %v365 = vshrl.u32 %v364, 7
      %v366 = vsub.s32 0, %v365
      %v367 = vrot.slane %v362, %v366
      %v433 = vunpack.c.l.b16 %v234
      %v434 = vunpack.c.h.b16 %v234
      %v435 = vunpack.c.l.b16 %v235
      %v436 = vunpack.c.h.b16 %v235
      %v437 = vunpack.c.l.b16 %v236
      %v438 = vunpack.c.h.b16 %v236
      %v439 = vunpack.c.l.b16 %v237
      %v440 = vunpack.c.h.b16 %v237
      %v441 = vunpack.c.l.b16 %v238
      %v442 = vunpack.c.h.b16 %v238
      %v443 = vunpack.c.l.b16 %v239
      %v444 = vunpack.c.h.b16 %v239
      %v445 = vunpack.c.l.b16 %v240
      %v446 = vunpack.c.h.b16 %v240
      %v447 = vunpack.c.l.b16 %v241
      %v448 = vunpack.c.h.b16 %v241
      %v449 = vunpack.c.l.b16 %v242
      %v450 = vunpack.c.h.b16 %v242
      %v451 = vunpack.c.l.b16 %v243
      %v452 = vunpack.c.h.b16 %v243
      %v453 = vunpack.c.l.b16 %v244
      %v454 = vunpack.c.h.b16 %v244
      %v455 = vunpack.c.l.b16 %v245
      %v456 = vunpack.c.h.b16 %v245
      %v457 = vunpack.c.l.b16 %v246
      %v458 = vunpack.c.h.b16 %v246
      %v459 = vunpack.c.l.b16 %v247
      %v460 = vunpack.c.h.b16 %v247
      %v461 = vunpack.c.l.b16 %v248
      %v462 = vunpack.c.h.b16 %v248
      %v463 = vunpack.c.l.b16 %v249
      %v464 = vunpack.c.h.b16 %v249
      %v465 = vunpack.c.l.b16 %v250
      %v466 = vunpack.c.h.b16 %v250
      %v467 = vunpack.c.l.b16 %v251
      %v468 = vunpack.c.h.b16 %v251
      %v469 = vunpack.c.l.b16 %v252
      %v470 = vunpack.c.h.b16 %v252
      %v471 = vunpack.c.l.b16 %v253
      %v472 = vunpack.c.h.b16 %v253
      %v473 = vunpack.c.l.b16 %v254
      %v474 = vunpack.c.h.b16 %v254
      %v475 = vunpack.c.l.b16 %v255
      %v476 = vunpack.c.h.b16 %v255
      %v477 = vunpack.c.l.b16 %v256
      %v478 = vunpack.c.h.b16 %v256
      %v479 = vunpack.c.l.b16 %v257
      %v480 = vunpack.c.h.b16 %v257
      %v481 = vunpack.c.l.b16 %v258
      %v482 = vunpack.c.h.b16 %v258
      %v483 = vunpack.c.l.b16 %v259
      %v484 = vunpack.c.h.b16 %v259
      %v485 = vunpack.c.l.b16 %v260
      %v486 = vunpack.c.h.b16 %v260
      %v487 = vunpack.c.l.b16 %v261
      %v488 = vunpack.c.h.b16 %v261
      %v489 = vunpack.c.l.b16 %v262
      %v490 = vunpack.c.h.b16 %v262
      %v491 = vunpack.c.l.b16 %v263
      %v492 = vunpack.c.h.b16 %v263
      %v493 = vunpack.c.l.b16 %v264
      %v494 = vunpack.c.h.b16 %v264
      %v495 = vunpack.c.l.b16 %v265
      %v496 = vunpack.c.h.b16 %v265
      %v497 = vunpack.c.l.b16 %v266
      %v498 = vunpack.c.h.b16 %v266
      %v499 = vunpack.c.l.b16 %v267
      %v500 = vunpack.c.h.b16 %v267
      %v501 = vunpack.c.l.b16 %v268
      %v502 = vunpack.c.h.b16 %v268
      %v503 = vunpack.c.l.b16 %v269
      %v504 = vunpack.c.h.b16 %v269
      %v505 = vunpack.c.l.b16 %v270
      %v506 = vunpack.c.h.b16 %v270
      %v507 = vunpack.c.l.b16 %v271
      %v508 = vunpack.c.h.b16 %v271
      %v509 = vunpack.c.l.b16 %v272
      %v510 = vunpack.c.h.b16 %v272
      %v511 = vunpack.c.l.b16 %v273
      %v512 = vunpack.c.h.b16 %v273
      %v513 = vunpack.c.l.b16 %v274
      %v514 = vunpack.c.h.b16 %v274
      %v515 = vunpack.c.l.b16 %v275
      %v516 = vunpack.c.h.b16 %v275
      %v517 = vunpack.c.l.b16 %v276
      %v518 = vunpack.c.h.b16 %v276
      %v519 = vunpack.c.l.b16 %v277
      %v520 = vunpack.c.h.b16 %v277
      %v521 = vunpack.c.l.b16 %v278
      %v522 = vunpack.c.h.b16 %v278
      %v523 = vunpack.c.l.b16 %v279
      %v524 = vunpack.c.h.b16 %v279
      %v525 = vunpack.c.l.b16 %v280
      %v526 = vunpack.c.h.b16 %v280
      %v527 = vunpack.c.l.b16 %v281
      %v528 = vunpack.c.h.b16 %v281
      %v529 = vunpack.c.l.b16 %v282
      %v530 = vunpack.c.h.b16 %v282
      %v531 = vunpack.c.l.b16 %v283
      %v532 = vunpack.c.h.b16 %v283
      %v533 = vunpack.c.l.b16 %v284
      %v534 = vunpack.c.h.b16 %v284
      %v535 = vunpack.c.l.b16 %v285
      %v536 = vunpack.c.h.b16 %v285
      %v537 = vunpack.c.l.b16 %v286
      %v538 = vunpack.c.h.b16 %v286
      %v539 = vunpack.c.l.b16 %v287
      %v540 = vunpack.c.h.b16 %v287
      %v541 = vunpack.c.l.b16 %v288
      %v542 = vunpack.c.h.b16 %v288
      %v543 = vunpack.c.l.b16 %v289
      %v544 = vunpack.c.h.b16 %v289
      %v545 = vunpack.c.l.b16 %v290
      %v546 = vunpack.c.h.b16 %v290
      %v547 = vunpack.c.l.b16 %v291
      %v548 = vunpack.c.h.b16 %v291
      %v549 = vunpack.c.l.b16 %v292
      %v550 = vunpack.c.h.b16 %v292
      %v551 = vunpack.c.l.b16 %v293
      %v552 = vunpack.c.h.b16 %v293
      %v553 = vunpack.c.l.b16 %v294
      %v554 = vunpack.c.h.b16 %v294
      %v555 = vunpack.c.l.b16 %v295
      %v556 = vunpack.c.h.b16 %v295
      %v557 = vunpack.c.l.b16 %v296
      %v558 = vunpack.c.h.b16 %v296
      %v559 = vunpack.c.l.b16 %v297
      %v560 = vunpack.c.h.b16 %v297
      %v561 = vpack.c.b16 %v437, %v433
      %v562 = vpack.c.b16 %v438, %v434
      %v563 = vpack.c.b16 %v439, %v435
      %v564 = vpack.c.b16 %v440, %v436
      %v565 = vpack.c.b16 %v445, %v441
      %v566 = vpack.c.b16 %v446, %v442
      %v567 = vpack.c.b16 %v447, %v443
      %v568 = vpack.c.b16 %v448, %v444
      %v569 = vpack.c.b16 %v453, %v449
      %v570 = vpack.c.b16 %v454, %v450
      %v571 = vpack.c.b16 %v455, %v451
      %v572 = vpack.c.b16 %v456, %v452
      %v573 = vpack.c.b16 %v461, %v457
      %v574 = vpack.c.b16 %v462, %v458
      %v575 = vpack.c.b16 %v463, %v459
      %v576 = vpack.c.b16 %v464, %v460
      %v577 = vpack.c.b16 %v469, %v465
      %v578 = vpack.c.b16 %v470, %v466
      %v579 = vpack.c.b16 %v471, %v467
      %v580 = vpack.c.b16 %v472, %v468
      %v581 = vpack.c.b16 %v477, %v473
      %v582 = vpack.c.b16 %v478, %v474
      %v583 = vpack.c.b16 %v479, %v475
      %v584 = vpack.c.b16 %v480, %v476
      %v585 = vpack.c.b16 %v485, %v481
      %v586 = vpack.c.b16 %v486, %v482
      %v587 = vpack.c.b16 %v487, %v483
      %v588 = vpack.c.b16 %v488, %v484
      %v589 = vpack.c.b16 %v493, %v489
      %v590 = vpack.c.b16 %v494, %v490
      %v591 = vpack.c.b16 %v495, %v491
      %v592 = vpack.c.b16 %v496, %v492
      %v593 = vpack.c.b16 %v501, %v497
      %v594 = vpack.c.b16 %v502, %v498
      %v595 = vpack.c.b16 %v503, %v499
      %v596 = vpack.c.b16 %v504, %v500
      %v597 = vpack.c.b16 %v509, %v505
      %v598 = vpack.c.b16 %v510, %v506
      %v599 = vpack.c.b16 %v511, %v507
      %v600 = vpack.c.b16 %v512, %v508
      %v601 = vpack.c.b16 %v517, %v513
      %v602 = vpack.c.b16 %v518, %v514
      %v603 = vpack.c.b16 %v519, %v515
      %v604 = vpack.c.b16 %v520, %v516
      %v605 = vpack.c.b16 %v525, %v521
      %v606 = vpack.c.b16 %v526, %v522
      %v607 = vpack.c.b16 %v527, %v523
      %v608 = vpack.c.b16 %v528, %v524
      %v609 = vpack.c.b16 %v533, %v529
      %v610 = vpack.c.b16 %v534, %v530
      %v611 = vpack.c.b16 %v535, %v531
      %v612 = vpack.c.b16 %v536, %v532
      %v613 = vpack.c.b16 %v541, %v537
      %v614 = vpack.c.b16 %v542, %v538
      %v615 = vpack.c.b16 %v543, %v539
      %v616 = vpack.c.b16 %v544, %v540
      %v617 = vpack.c.b16 %v549, %v545
      %v618 = vpack.c.b16 %v550, %v546
      %v619 = vpack.c.b16 %v551, %v547
      %v620 = vpack.c.b16 %v552, %v548
      %v621 = vpack.c.b16 %v557, %v553
      %v622 = vpack.c.b16 %v558, %v554
      %v623 = vpack.c.b16 %v559, %v555
      %v624 = vpack.c.b16 %v560, %v556
      %v753 = vunpack.c.l.b16 %v298
      %v754 = vunpack.c.l.b16 %v299
      %v755 = vunpack.c.l.b16 %v300
      %v756 = vunpack.c.l.b16 %v301
      %v757 = vunpack.c.l.b16 %v302
      %v758 = vunpack.c.l.b16 %v303
      %v759 = vunpack.c.l.b16 %v304
      %v760 = vunpack.c.l.b16 %v305
      %v761 = vunpack.c.l.b16 %v306
      %v762 = vunpack.c.l.b16 %v307
      %v763 = vunpack.c.l.b16 %v308
      %v764 = vunpack.c.l.b16 %v309
      %v765 = vunpack.c.l.b16 %v310
      %v766 = vunpack.c.l.b16 %v311
      %v767 = vunpack.c.l.b16 %v312
      %v768 = vunpack.c.l.b16 %v313
      %v769 = vunpack.c.l.b16 %v314
      %v770 = vunpack.c.l.b16 %v315
      %v771 = vunpack.c.l.b16 %v316
      %v772 = vunpack.c.l.b16 %v317
      %v773 = vunpack.c.l.b16 %v318
      %v774 = vunpack.c.l.b16 %v319
      %v775 = vunpack.c.l.b16 %v320
      %v776 = vunpack.c.l.b16 %v321
      %v777 = vunpack.c.l.b16 %v322
      %v778 = vunpack.c.l.b16 %v323
      %v779 = vunpack.c.l.b16 %v324
      %v780 = vunpack.c.l.b16 %v325
      %v781 = vunpack.c.l.b16 %v326
      %v782 = vunpack.c.l.b16 %v327
      %v783 = vunpack.c.l.b16 %v328
      %v784 = vunpack.c.l.b16 %v329
      %v785 = vunpack.c.l.b16 %v330
      %v786 = vunpack.c.l.b16 %v331
      %v787 = vunpack.c.l.b16 %v332
      %v788 = vunpack.c.l.b16 %v333
      %v789 = vunpack.c.l.b16 %v334
      %v790 = vunpack.c.l.b16 %v335
      %v791 = vunpack.c.l.b16 %v336
      %v792 = vunpack.c.l.b16 %v337
      %v793 = vunpack.c.l.b16 %v338
      %v794 = vunpack.c.l.b16 %v339
      %v795 = vunpack.c.l.b16 %v340
      %v796 = vunpack.c.l.b16 %v341
      %v797 = vunpack.c.l.b16 %v342
      %v798 = vunpack.c.l.b16 %v343
      %v799 = vunpack.c.l.b16 %v344
      %v800 = vunpack.c.l.b16 %v345
      %v801 = vunpack.c.l.b16 %v346
      %v802 = vunpack.c.l.b16 %v347
      %v803 = vunpack.c.l.b16 %v348
      %v804 = vunpack.c.l.b16 %v349
      %v805 = vunpack.c.l.b16 %v350
      %v806 = vunpack.c.l.b16 %v351
      %v807 = vunpack.c.l.b16 %v352
      %v808 = vunpack.c.l.b16 %v353
      %v809 = vunpack.c.l.b16 %v354
      %v810 = vunpack.c.l.b16 %v355
      %v811 = vunpack.c.l.b16 %v356
      %v812 = vunpack.c.l.b16 %v357
      %v813 = vunpack.c.l.b16 %v358
      %v814 = vunpack.c.l.b16 %v359
      %v815 = vunpack.c.l.b16 %v360
      %v816 = vunpack.c.l.b16 %v361
      %v817 = vpack.c.b16 %v754, %v753
      %v818 = vpack.c.b16 %v756, %v755
      %v819 = vpack.c.b16 %v758, %v757
      %v820 = vpack.c.b16 %v760, %v759
      %v821 = vpack.c.b16 %v762, %v761
      %v822 = vpack.c.b16 %v764, %v763
      %v823 = vpack.c.b16 %v766, %v765
      %v824 = vpack.c.b16 %v768, %v767
      %v825 = vpack.c.b16 %v770, %v769
      %v826 = vpack.c.b16 %v772, %v771
      %v827 = vpack.c.b16 %v774, %v773
      %v828 = vpack.c.b16 %v776, %v775
      %v829 = vpack.c.b16 %v778, %v777
      %v830 = vpack.c.b16 %v780, %v779
      %v831 = vpack.c.b16 %v782, %v781
      %v832 = vpack.c.b16 %v784, %v783
      %v833 = vpack.c.b16 %v786, %v785
      %v834 = vpack.c.b16 %v788, %v787
      %v835 = vpack.c.b16 %v790, %v789
      %v836 = vpack.c.b16 %v792, %v791
      %v837 = vpack.c.b16 %v794, %v793
      %v838 = vpack.c.b16 %v796, %v795
      %v839 = vpack.c.b16 %v798, %v797
      %v840 = vpack.c.b16 %v800, %v799
      %v841 = vpack.c.b16 %v802, %v801
      %v842 = vpack.c.b16 %v804, %v803
      %v843 = vpack.c.b16 %v806, %v805
      %v844 = vpack.c.b16 %v808, %v807
      %v845 = vpack.c.b16 %v810, %v809
      %v846 = vpack.c.b16 %v812, %v811
      %v847 = vpack.c.b16 %v814, %v813
      %v848 = vpack.c.b16 %v816, %v815
      %881 = vmatprep.subr.bf16.mxu0 0
      %882 = vmatpush1.bf16.msra.mxu0 %v817
      %883 = vmatprep.subr.bf16.mxu0 0
      %884 = vmatpush1.bf16.msra.mxu0 %v818
      %885 = vmatprep.subr.bf16.mxu0 0
      %886 = vmatpush1.bf16.msra.mxu0 %v819
      %887 = vmatprep.subr.bf16.mxu0 0
      %888 = vmatpush1.bf16.msra.mxu0 %v820
      %889 = vmatprep.subr.bf16.mxu0 0
      %890 = vmatpush1.bf16.msra.mxu0 %v821
      %891 = vmatprep.subr.bf16.mxu0 0
      %892 = vmatpush1.bf16.msra.mxu0 %v822
      %893 = vmatprep.subr.bf16.mxu0 0
      %894 = vmatpush1.bf16.msra.mxu0 %v823
      %895 = vmatprep.subr.bf16.mxu0 0
      %896 = vmatpush1.bf16.msra.mxu0 %v824
      %897 = vmatprep.subr.bf16.mxu0 0
      %898 = vmatpush1.bf16.msra.mxu0 %v825
      %899 = vmatprep.subr.bf16.mxu0 0
      %900 = vmatpush1.bf16.msra.mxu0 %v826
      %901 = vmatprep.subr.bf16.mxu0 0
      %902 = vmatpush1.bf16.msra.mxu0 %v827
      %903 = vmatprep.subr.bf16.mxu0 0
      %904 = vmatpush1.bf16.msra.mxu0 %v828
      %905 = vmatprep.subr.bf16.mxu0 0
      %906 = vmatpush1.bf16.msra.mxu0 %v829
      %907 = vmatprep.subr.bf16.mxu0 0
      %908 = vmatpush1.bf16.msra.mxu0 %v830
      %909 = vmatprep.subr.bf16.mxu0 0
      %910 = vmatpush1.bf16.msra.mxu0 %v831
      %911 = vmatprep.subr.bf16.mxu0 0
      %912 = vmatpush1.bf16.msra.mxu0 %v832
      %913 = vmatprep.mubr.bf16.mxu0 %v562
      %914 = vmatmul.mubr.bf16.gmra.mrb[0].mxu0 %v561
      %v915 = vpop.f32.mrb[0].mxu0
      %v916 = vadd.f32 %v367, %v915
      %v917 = vpop.f32.mrb[0].mxu0
      %v918 = vpop.f32.mrb[0].mxu0
      %v919 = vadd.f32 %v367, %v918
      %v920 = vpop.f32.mrb[0].mxu0
      %921 = vmatprep.mubr.bf16.mxu0 %v566
      %922 = vmatmul.mubr.bf16.gmra.mrb[0].mxu0 %v565
      %v923 = vpop.f32.mrb[0].mxu0
      %v924 = vadd.f32 %v367, %v923
      %v925 = vpop.f32.mrb[0].mxu0
      %v926 = vpop.f32.mrb[0].mxu0
      %v927 = vadd.f32 %v367, %v926
      %v928 = vpop.f32.mrb[0].mxu0
      %929 = vmatprep.mubr.bf16.mxu0 %v570
      %930 = vmatmul.mubr.bf16.gmra.mrb[0].mxu0 %v569
      %v931 = vpop.f32.mrb[0].mxu0
      %v932 = vadd.f32 %v367, %v931
      %v933 = vpop.f32.mrb[0].mxu0
      %v934 = vpop.f32.mrb[0].mxu0
      %v935 = vadd.f32 %v367, %v934
      %v936 = vpop.f32.mrb[0].mxu0
      %937 = vmatprep.mubr.bf16.mxu0 %v574
      %938 = vmatmul.mubr.bf16.gmra.mrb[0].mxu0 %v573
      %v939 = vpop.f32.mrb[0].mxu0
      %v940 = vadd.f32 %v367, %v939
      %v941 = vpop.f32.mrb[0].mxu0
      %v942 = vpop.f32.mrb[0].mxu0
      %v943 = vadd.f32 %v367, %v942
      %v944 = vpop.f32.mrb[0].mxu0
      %945 = vmatprep.mubr.bf16.mxu0 %v578
      %946 = vmatmul.mubr.bf16.gmra.mrb[0].mxu0 %v577
      %v947 = vpop.f32.mrb[0].mxu0
      %v948 = vadd.f32 %v367, %v947
      %v949 = vpop.f32.mrb[0].mxu0
      %v950 = vpop.f32.mrb[0].mxu0
      %v951 = vadd.f32 %v367, %v950
      %v952 = vpop.f32.mrb[0].mxu0
      %953 = vmatprep.mubr.bf16.mxu0 %v582
      %954 = vmatmul.mubr.bf16.gmra.mrb[0].mxu0 %v581
      %v955 = vpop.f32.mrb[0].mxu0
      %v956 = vadd.f32 %v367, %v955
      %v957 = vpop.f32.mrb[0].mxu0
      %v958 = vpop.f32.mrb[0].mxu0
      %v959 = vadd.f32 %v367, %v958
      %v960 = vpop.f32.mrb[0].mxu0
      %961 = vmatprep.mubr.bf16.mxu0 %v586
      %962 = vmatmul.mubr.bf16.gmra.mrb[0].mxu0 %v585
      %v963 = vpop.f32.mrb[0].mxu0
      %v964 = vadd.f32 %v367, %v963
      %v965 = vpop.f32.mrb[0].mxu0
      %v966 = vpop.f32.mrb[0].mxu0
      %v967 = vadd.f32 %v367, %v966
      %v968 = vpop.f32.mrb[0].mxu0
      %969 = vmatprep.mubr.bf16.mxu0 %v590
      %970 = vmatmul.mubr.bf16.gmra.mrb[0].mxu0 %v589
      %v971 = vpop.f32.mrb[0].mxu0
      %v972 = vadd.f32 %v367, %v971
      %v973 = vpop.f32.mrb[0].mxu0
      %v974 = vpop.f32.mrb[0].mxu0
      %v975 = vadd.f32 %v367, %v974
      %v976 = vpop.f32.mrb[0].mxu0
      %977 = vmatprep.mubr.bf16.mxu0 %v594
      %978 = vmatmul.mubr.bf16.gmra.mrb[0].mxu0 %v593
      %v979 = vpop.f32.mrb[0].mxu0
      %v980 = vadd.f32 %v367, %v979
      %v981 = vpop.f32.mrb[0].mxu0
      %v982 = vpop.f32.mrb[0].mxu0
      %v983 = vadd.f32 %v367, %v982
      %v984 = vpop.f32.mrb[0].mxu0
      %985 = vmatprep.mubr.bf16.mxu0 %v598
      %986 = vmatmul.mubr.bf16.gmra.mrb[0].mxu0 %v597
      %v987 = vpop.f32.mrb[0].mxu0
      %v988 = vadd.f32 %v367, %v987
      %v989 = vpop.f32.mrb[0].mxu0
      %v990 = vpop.f32.mrb[0].mxu0
      %v991 = vadd.f32 %v367, %v990
      %v992 = vpop.f32.mrb[0].mxu0
      %993 = vmatprep.mubr.bf16.mxu0 %v602
      %994 = vmatmul.mubr.bf16.gmra.mrb[0].mxu0 %v601
      %v995 = vpop.f32.mrb[0].mxu0
      %v996 = vadd.f32 %v367, %v995
      %v997 = vpop.f32.mrb[0].mxu0
      %v998 = vpop.f32.mrb[0].mxu0
      %v999 = vadd.f32 %v367, %v998
      %v1000 = vpop.f32.mrb[0].mxu0
      %1001 = vmatprep.mubr.bf16.mxu0 %v606
      %1002 = vmatmul.mubr.bf16.gmra.mrb[0].mxu0 %v605
      %v1003 = vpop.f32.mrb[0].mxu0
      %v1004 = vadd.f32 %v367, %v1003
      %v1005 = vpop.f32.mrb[0].mxu0
      %v1006 = vpop.f32.mrb[0].mxu0
      %v1007 = vadd.f32 %v367, %v1006
      %v1008 = vpop.f32.mrb[0].mxu0
      %1009 = vmatprep.mubr.bf16.mxu0 %v610
      %1010 = vmatmul.mubr.bf16.gmra.mrb[0].mxu0 %v609
      %v1011 = vpop.f32.mrb[0].mxu0
      %v1012 = vadd.f32 %v367, %v1011
      %v1013 = vpop.f32.mrb[0].mxu0
      %v1014 = vpop.f32.mrb[0].mxu0
      %v1015 = vadd.f32 %v367, %v1014
      %v1016 = vpop.f32.mrb[0].mxu0
      %1017 = vmatprep.mubr.bf16.mxu0 %v614
      %1018 = vmatmul.mubr.bf16.gmra.mrb[0].mxu0 %v613
      %v1019 = vpop.f32.mrb[0].mxu0
      %v1020 = vadd.f32 %v367, %v1019
      %v1021 = vpop.f32.mrb[0].mxu0
      %v1022 = vpop.f32.mrb[0].mxu0
      %v1023 = vadd.f32 %v367, %v1022
      %v1024 = vpop.f32.mrb[0].mxu0
      %1025 = vmatprep.mubr.bf16.mxu0 %v618
      %1026 = vmatmul.mubr.bf16.gmra.mrb[0].mxu0 %v617
      %v1027 = vpop.f32.mrb[0].mxu0
      %v1028 = vadd.f32 %v367, %v1027
      %v1029 = vpop.f32.mrb[0].mxu0
      %v1030 = vpop.f32.mrb[0].mxu0
      %v1031 = vadd.f32 %v367, %v1030
      %v1032 = vpop.f32.mrb[0].mxu0
      %1033 = vmatprep.mubr.bf16.mxu0 %v622
      %1034 = vmatmul.mubr.bf16.gmra.mrb[0].mxu0 %v621
      %v1035 = vpop.f32.mrb[0].mxu0
      %v1036 = vadd.f32 %v367, %v1035
      %v1037 = vpop.f32.mrb[0].mxu0
      %v1038 = vpop.f32.mrb[0].mxu0
      %v1039 = vadd.f32 %v367, %v1038
      %v1040 = vpop.f32.mrb[0].mxu0
      %1041 = vdwg.mxu0
      %1042 = vmatprep.subr.bf16.mxu0 0
      %1043 = vmatpush1.bf16.msra.mxu0 %v833
      %1044 = vmatprep.subr.bf16.mxu0 0
      %1045 = vmatpush1.bf16.msra.mxu0 %v834
      %1046 = vmatprep.subr.bf16.mxu0 0
      %1047 = vmatpush1.bf16.msra.mxu0 %v835
      %1048 = vmatprep.subr.bf16.mxu0 0
      %1049 = vmatpush1.bf16.msra.mxu0 %v836
      %1050 = vmatprep.subr.bf16.mxu0 0
      %1051 = vmatpush1.bf16.msra.mxu0 %v837
      %1052 = vmatprep.subr.bf16.mxu0 0
      %1053 = vmatpush1.bf16.msra.mxu0 %v838
      %1054 = vmatprep.subr.bf16.mxu0 0
      %1055 = vmatpush1.bf16.msra.mxu0 %v839
      %1056 = vmatprep.subr.bf16.mxu0 0
      %1057 = vmatpush1.bf16.msra.mxu0 %v840
      %1058 = vmatprep.subr.bf16.mxu0 0
      %1059 = vmatpush1.bf16.msra.mxu0 %v841
      %1060 = vmatprep.subr.bf16.mxu0 0
      %1061 = vmatpush1.bf16.msra.mxu0 %v842
      %1062 = vmatprep.subr.bf16.mxu0 0
      %1063 = vmatpush1.bf16.msra.mxu0 %v843
      %1064 = vmatprep.subr.bf16.mxu0 0
      %1065 = vmatpush1.bf16.msra.mxu0 %v844
      %1066 = vmatprep.subr.bf16.mxu0 0
      %1067 = vmatpush1.bf16.msra.mxu0 %v845
      %1068 = vmatprep.subr.bf16.mxu0 0
      %1069 = vmatpush1.bf16.msra.mxu0 %v846
      %1070 = vmatprep.subr.bf16.mxu0 0
      %1071 = vmatpush1.bf16.msra.mxu0 %v847
      %1072 = vmatprep.subr.bf16.mxu0 0
      %1073 = vmatpush1.bf16.msra.mxu0 %v848
      %1074 = vmatprep.mubr.bf16.mxu0 %v564
      %1075 = vmatmul.mubr.bf16.gmra.mrb[0].mxu0 %v563
      %v1076 = vpop.f32.mrb[0].mxu0
      %v1077 = vadd.f32 %v916, %v1076
      %v1078 = vpop.f32.mrb[0].mxu0
      %v1079 = vpop.f32.mrb[0].mxu0
      %v1080 = vadd.f32 %v919, %v1079
      %v1081 = vpop.f32.mrb[0].mxu0
      %1082 = vmatprep.mubr.bf16.mxu0 %v568
      %1083 = vmatmul.mubr.bf16.gmra.mrb[0].mxu0 %v567
      %v1084 = vpop.f32.mrb[0].mxu0
      %v1085 = vadd.f32 %v924, %v1084
      %v1086 = vpop.f32.mrb[0].mxu0
      %v1087 = vpop.f32.mrb[0].mxu0
      %v1088 = vadd.f32 %v927, %v1087
      %v1089 = vpop.f32.mrb[0].mxu0
      %1090 = vmatprep.mubr.bf16.mxu0 %v572
      %1091 = vmatmul.mubr.bf16.gmra.mrb[0].mxu0 %v571
      %v1092 = vpop.f32.mrb[0].mxu0
      %v1093 = vadd.f32 %v932, %v1092
      %v1094 = vpop.f32.mrb[0].mxu0
      %v1095 = vpop.f32.mrb[0].mxu0
      %v1096 = vadd.f32 %v935, %v1095
      %v1097 = vpop.f32.mrb[0].mxu0
      %1098 = vmatprep.mubr.bf16.mxu0 %v576
      %1099 = vmatmul.mubr.bf16.gmra.mrb[0].mxu0 %v575
      %v1100 = vpop.f32.mrb[0].mxu0
      %v1101 = vadd.f32 %v940, %v1100
      %v1102 = vpop.f32.mrb[0].mxu0
      %v1103 = vpop.f32.mrb[0].mxu0
      %v1104 = vadd.f32 %v943, %v1103
      %v1105 = vpop.f32.mrb[0].mxu0
      %1106 = vmatprep.mubr.bf16.mxu0 %v580
      %1107 = vmatmul.mubr.bf16.gmra.mrb[0].mxu0 %v579
      %v1108 = vpop.f32.mrb[0].mxu0
      %v1109 = vadd.f32 %v948, %v1108
      %v1110 = vpop.f32.mrb[0].mxu0
      %v1111 = vpop.f32.mrb[0].mxu0
      %v1112 = vadd.f32 %v951, %v1111
      %v1113 = vpop.f32.mrb[0].mxu0
      %1114 = vmatprep.mubr.bf16.mxu0 %v584
      %1115 = vmatmul.mubr.bf16.gmra.mrb[0].mxu0 %v583
      %v1116 = vpop.f32.mrb[0].mxu0
      %v1117 = vadd.f32 %v956, %v1116
      %v1118 = vpop.f32.mrb[0].mxu0
      %v1119 = vpop.f32.mrb[0].mxu0
      %v1120 = vadd.f32 %v959, %v1119
      %v1121 = vpop.f32.mrb[0].mxu0
      %1122 = vmatprep.mubr.bf16.mxu0 %v588
      %1123 = vmatmul.mubr.bf16.gmra.mrb[0].mxu0 %v587
      %v1124 = vpop.f32.mrb[0].mxu0
      %v1125 = vadd.f32 %v964, %v1124
      %v1126 = vpop.f32.mrb[0].mxu0
      %v1127 = vpop.f32.mrb[0].mxu0
      %v1128 = vadd.f32 %v967, %v1127
      %v1129 = vpop.f32.mrb[0].mxu0
      %1130 = vmatprep.mubr.bf16.mxu0 %v592
      %1131 = vmatmul.mubr.bf16.gmra.mrb[0].mxu0 %v591
      %v1132 = vpop.f32.mrb[0].mxu0
      %v1133 = vadd.f32 %v972, %v1132
      %v1134 = vpop.f32.mrb[0].mxu0
      %v1135 = vpop.f32.mrb[0].mxu0
      %v1136 = vadd.f32 %v975, %v1135
      %v1137 = vpop.f32.mrb[0].mxu0
      %1138 = vmatprep.mubr.bf16.mxu0 %v596
      %1139 = vmatmul.mubr.bf16.gmra.mrb[0].mxu0 %v595
      %v1140 = vpop.f32.mrb[0].mxu0
      %v1141 = vadd.f32 %v980, %v1140
      %v1142 = vpop.f32.mrb[0].mxu0
      %v1143 = vpop.f32.mrb[0].mxu0
      %v1144 = vadd.f32 %v983, %v1143
      %v1145 = vpop.f32.mrb[0].mxu0
      %1146 = vmatprep.mubr.bf16.mxu0 %v600
      %1147 = vmatmul.mubr.bf16.gmra.mrb[0].mxu0 %v599
      %v1148 = vpop.f32.mrb[0].mxu0
      %v1149 = vadd.f32 %v988, %v1148
      %v1150 = vpop.f32.mrb[0].mxu0
      %v1151 = vpop.f32.mrb[0].mxu0
      %v1152 = vadd.f32 %v991, %v1151
      %v1153 = vpop.f32.mrb[0].mxu0
      %1154 = vmatprep.mubr.bf16.mxu0 %v604
      %1155 = vmatmul.mubr.bf16.gmra.mrb[0].mxu0 %v603
      %v1156 = vpop.f32.mrb[0].mxu0
      %v1157 = vadd.f32 %v996, %v1156
      %v1158 = vpop.f32.mrb[0].mxu0
      %v1159 = vpop.f32.mrb[0].mxu0
      %v1160 = vadd.f32 %v999, %v1159
      %v1161 = vpop.f32.mrb[0].mxu0
      %1162 = vmatprep.mubr.bf16.mxu0 %v608
      %1163 = vmatmul.mubr.bf16.gmra.mrb[0].mxu0 %v607
      %v1164 = vpop.f32.mrb[0].mxu0
      %v1165 = vadd.f32 %v1004, %v1164
      %v1166 = vpop.f32.mrb[0].mxu0
      %v1167 = vpop.f32.mrb[0].mxu0
      %v1168 = vadd.f32 %v1007, %v1167
      %v1169 = vpop.f32.mrb[0].mxu0
      %1170 = vmatprep.mubr.bf16.mxu0 %v612
      %1171 = vmatmul.mubr.bf16.gmra.mrb[0].mxu0 %v611
      %v1172 = vpop.f32.mrb[0].mxu0
      %v1173 = vadd.f32 %v1012, %v1172
      %v1174 = vpop.f32.mrb[0].mxu0
      %v1175 = vpop.f32.mrb[0].mxu0
      %v1176 = vadd.f32 %v1015, %v1175
      %v1177 = vpop.f32.mrb[0].mxu0
      %1178 = vmatprep.mubr.bf16.mxu0 %v616
      %1179 = vmatmul.mubr.bf16.gmra.mrb[0].mxu0 %v615
      %v1180 = vpop.f32.mrb[0].mxu0
      %v1181 = vadd.f32 %v1020, %v1180
      %v1182 = vpop.f32.mrb[0].mxu0
      %v1183 = vpop.f32.mrb[0].mxu0
      %v1184 = vadd.f32 %v1023, %v1183
      %v1185 = vpop.f32.mrb[0].mxu0
      %1186 = vmatprep.mubr.bf16.mxu0 %v620
      %1187 = vmatmul.mubr.bf16.gmra.mrb[0].mxu0 %v619
      %v1188 = vpop.f32.mrb[0].mxu0
      %v1189 = vadd.f32 %v1028, %v1188
      %v1190 = vpop.f32.mrb[0].mxu0
      %v1191 = vpop.f32.mrb[0].mxu0
      %v1192 = vadd.f32 %v1031, %v1191
      %v1193 = vpop.f32.mrb[0].mxu0
      %1194 = vmatprep.mubr.bf16.mxu0 %v624
      %1195 = vmatmul.mubr.bf16.gmra.mrb[0].mxu0 %v623
      %v1196 = vpop.f32.mrb[0].mxu0
      %v1197 = vadd.f32 %v1036, %v1196
      %v1198 = vpop.f32.mrb[0].mxu0
      %v1199 = vpop.f32.mrb[0].mxu0
      %v1200 = vadd.f32 %v1039, %v1199
      %v1201 = vpop.f32.mrb[0].mxu0
      %1202 = vdwg.mxu0
      %v1203 = vmax.f32 %v1077, 0.0
      %v1204 = vmax.f32 %v1080, 0.0
      %v1205 = vmax.f32 %v1085, 0.0
      %v1206 = vmax.f32 %v1088, 0.0
      %v1207 = vmax.f32 %v1093, 0.0
      %v1208 = vmax.f32 %v1096, 0.0
      %v1209 = vmax.f32 %v1101, 0.0
      %v1210 = vmax.f32 %v1104, 0.0
      %v1211 = vmax.f32 %v1109, 0.0
      %v1212 = vmax.f32 %v1112, 0.0
      %v1213 = vmax.f32 %v1117, 0.0
      %v1214 = vmax.f32 %v1120, 0.0
      %v1215 = vmax.f32 %v1125, 0.0
      %v1216 = vmax.f32 %v1128, 0.0
      %v1217 = vmax.f32 %v1133, 0.0
      %v1218 = vmax.f32 %v1136, 0.0
      %v1219 = vmax.f32 %v1141, 0.0
      %v1220 = vmax.f32 %v1144, 0.0
      %v1221 = vmax.f32 %v1149, 0.0
      %v1222 = vmax.f32 %v1152, 0.0
      %v1223 = vmax.f32 %v1157, 0.0
      %v1224 = vmax.f32 %v1160, 0.0
      %v1225 = vmax.f32 %v1165, 0.0
      %v1226 = vmax.f32 %v1168, 0.0
      %v1227 = vmax.f32 %v1173, 0.0
      %v1228 = vmax.f32 %v1176, 0.0
      %v1229 = vmax.f32 %v1181, 0.0
      %v1230 = vmax.f32 %v1184, 0.0
      %v1231 = vmax.f32 %v1189, 0.0
      %v1232 = vmax.f32 %v1192, 0.0
      %v1233 = vmax.f32 %v1197, 0.0
      %v1234 = vmax.f32 %v1200, 0.0
      %v1235 = vpack.c.bf16 %v1204, %v1203
      %v1236 = vpack.c.bf16 %v1206, %v1205
      %v1237 = vpack.c.bf16 %v1208, %v1207
      %v1238 = vpack.c.bf16 %v1210, %v1209
      %v1239 = vpack.c.bf16 %v1212, %v1211
      %v1240 = vpack.c.bf16 %v1214, %v1213
      %v1241 = vpack.c.bf16 %v1216, %v1215
      %v1242 = vpack.c.bf16 %v1218, %v1217
      %v1243 = vpack.c.bf16 %v1220, %v1219
      %v1244 = vpack.c.bf16 %v1222, %v1221
      %v1245 = vpack.c.bf16 %v1224, %v1223
      %v1246 = vpack.c.bf16 %v1226, %v1225
      %v1247 = vpack.c.bf16 %v1228, %v1227
      %v1248 = vpack.c.bf16 %v1230, %v1229
      %v1249 = vpack.c.bf16 %v1232, %v1231
      %v1250 = vpack.c.bf16 %v1234, %v1233
      %v1251 = vld [vmem:[%s3] sm:$0xf]
      %v1252 = vld [vmem:[%s3 + $0x4] sm:$0xf]
      %v1253 = vld [vmem:[%s3 + $0x8] sm:$0xf]
      %v1254 = vld [vmem:[%s3 + $0xc] sm:$0xf]
      %v1255 = vld [vmem:[%s3 + $0x10] sm:$0xf]
      %v1256 = vld [vmem:[%s3 + $0x14] sm:$0xf]
      %v1257 = vld [vmem:[%s3 + $0x18] sm:$0xf]
      %v1258 = vld [vmem:[%s3 + $0x1c] sm:$0xf]
      %v1259 = vld [vmem:[%s3 + $0x20] sm:$0xf]
      %v1260 = vld [vmem:[%s3 + $0x24] sm:$0xf]
      %v1261 = vld [vmem:[%s3 + $0x28] sm:$0xf]
      %v1262 = vld [vmem:[%s3 + $0x2c] sm:$0xf]
      %v1263 = vld [vmem:[%s3 + $0x30] sm:$0xf]
      %v1264 = vld [vmem:[%s3 + $0x34] sm:$0xf]
      %v1265 = vld [vmem:[%s3 + $0x38] sm:$0xf]
      %v1266 = vld [vmem:[%s3 + $0x3c] sm:$0xf]
      %v1267 = vld [vmem:[#allocation2] sm:$0x1]
      %v1269 = vlaneseq
      %v1270 = vshrl.u32 %v1269, 7
      %v1271 = vsub.s32 0, %v1270
      %v1272 = vrot.slane %v1267, %v1271
      %v1290 = vunpack.c.l.b16 %v1251
      %v1291 = vunpack.c.l.b16 %v1252
      %v1292 = vunpack.c.l.b16 %v1253
      %v1293 = vunpack.c.l.b16 %v1254
      %v1294 = vunpack.c.l.b16 %v1255
      %v1295 = vunpack.c.l.b16 %v1256
      %v1296 = vunpack.c.l.b16 %v1257
      %v1297 = vunpack.c.l.b16 %v1258
      %v1298 = vunpack.c.l.b16 %v1259
      %v1299 = vunpack.c.l.b16 %v1260
      %v1300 = vunpack.c.l.b16 %v1261
      %v1301 = vunpack.c.l.b16 %v1262
      %v1302 = vunpack.c.l.b16 %v1263
      %v1303 = vunpack.c.l.b16 %v1264
      %v1304 = vunpack.c.l.b16 %v1265
      %v1305 = vunpack.c.l.b16 %v1266
      %v1306 = vpack.c.b16 %v1291, %v1290
      %v1307 = vpack.c.b16 %v1293, %v1292
      %v1308 = vpack.c.b16 %v1295, %v1294
      %v1309 = vpack.c.b16 %v1297, %v1296
      %v1310 = vpack.c.b16 %v1299, %v1298
      %v1311 = vpack.c.b16 %v1301, %v1300
      %v1312 = vpack.c.b16 %v1303, %v1302
      %v1313 = vpack.c.b16 %v1305, %v1304
      %1322 = vmatprep.subr.bf16.mxu0 0
      %1323 = vmatpush1.bf16.msra.mxu0 %v1306
      %1324 = vmatprep.subr.bf16.mxu0 0
      %1325 = vmatpush1.bf16.msra.mxu0 %v1307
      %1326 = vmatprep.subr.bf16.mxu0 0
      %1327 = vmatpush1.bf16.msra.mxu0 %v1308
      %1328 = vmatprep.subr.bf16.mxu0 0
      %1329 = vmatpush1.bf16.msra.mxu0 %v1309
      %1330 = vmatprep.subr.bf16.mxu0 0
      %1331 = vmatpush1.bf16.msra.mxu0 %v1310
      %1332 = vmatprep.subr.bf16.mxu0 0
      %1333 = vmatpush1.bf16.msra.mxu0 %v1311
      %1334 = vmatprep.subr.bf16.mxu0 0
      %1335 = vmatpush1.bf16.msra.mxu0 %v1312
      %1336 = vmatprep.subr.bf16.mxu0 0
      %1337 = vmatpush1.bf16.msra.mxu0 %v1313
      %1338 = vmatprep.subr.bf16.mxu0 0
      %1339 = vmatpush1.bf16.msra.mxu0 0
      %1340 = vmatprep.subr.bf16.mxu0 0
      %1341 = vmatpush1.bf16.msra.mxu0 0
      %1342 = vmatprep.subr.bf16.mxu0 0
      %1343 = vmatpush1.bf16.msra.mxu0 0
      %1344 = vmatprep.subr.bf16.mxu0 0
      %1345 = vmatpush1.bf16.msra.mxu0 0
      %1346 = vmatprep.subr.bf16.mxu0 0
      %1347 = vmatpush1.bf16.msra.mxu0 0
      %1348 = vmatprep.subr.bf16.mxu0 0
      %1349 = vmatpush1.bf16.msra.mxu0 0
      %1350 = vmatprep.subr.bf16.mxu0 0
      %1351 = vmatpush1.bf16.msra.mxu0 0
      %1352 = vmatprep.subr.bf16.mxu0 0
      %1353 = vmatpush1.bf16.msra.mxu0 0
      %1354 = vmatprep.mubr.bf16.mxu0 0
      %1355 = vmatmul.mubr.bf16.gmra.mrb[0].mxu0 %v1235
      %v1356 = vpop.f32.mrb[0].mxu0
      %v1357 = vadd.f32 %v1272, %v1356
      %v1358 = vpop.f32.mrb[0].mxu0
      %v1359 = vpop.f32.mrb[0].mxu0
      %v1360 = vadd.f32 %v1272, %v1359
      %v1361 = vpop.f32.mrb[0].mxu0
      %1362 = vmatprep.mubr.bf16.mxu0 0
      %1363 = vmatmul.mubr.bf16.gmra.mrb[0].mxu0 %v1236
      %v1364 = vpop.f32.mrb[0].mxu0
      %v1365 = vadd.f32 %v1272, %v1364
      %v1366 = vpop.f32.mrb[0].mxu0
      %v1367 = vpop.f32.mrb[0].mxu0
      %v1368 = vadd.f32 %v1272, %v1367
      %v1369 = vpop.f32.mrb[0].mxu0
      %1370 = vmatprep.mubr.bf16.mxu0 0
      %1371 = vmatmul.mubr.bf16.gmra.mrb[0].mxu0 %v1237
      %v1372 = vpop.f32.mrb[0].mxu0
      %v1373 = vadd.f32 %v1272, %v1372
      %v1374 = vpop.f32.mrb[0].mxu0
      %v1375 = vpop.f32.mrb[0].mxu0
      %v1376 = vadd.f32 %v1272, %v1375
      %v1377 = vpop.f32.mrb[0].mxu0
      %1378 = vmatprep.mubr.bf16.mxu0 0
      %1379 = vmatmul.mubr.bf16.gmra.mrb[0].mxu0 %v1238
      %v1380 = vpop.f32.mrb[0].mxu0
      %v1381 = vadd.f32 %v1272, %v1380
      %v1382 = vpop.f32.mrb[0].mxu0
      %v1383 = vpop.f32.mrb[0].mxu0
      %v1384 = vadd.f32 %v1272, %v1383
      %v1385 = vpop.f32.mrb[0].mxu0
      %1386 = vmatprep.mubr.bf16.mxu0 0
      %1387 = vmatmul.mubr.bf16.gmra.mrb[0].mxu0 %v1239
      %v1388 = vpop.f32.mrb[0].mxu0
      %v1389 = vadd.f32 %v1272, %v1388
      %v1390 = vpop.f32.mrb[0].mxu0
      %v1391 = vpop.f32.mrb[0].mxu0
      %v1392 = vadd.f32 %v1272, %v1391
      %v1393 = vpop.f32.mrb[0].mxu0
      %1394 = vmatprep.mubr.bf16.mxu0 0
      %1395 = vmatmul.mubr.bf16.gmra.mrb[0].mxu0 %v1240
      %v1396 = vpop.f32.mrb[0].mxu0
      %v1397 = vadd.f32 %v1272, %v1396
      %v1398 = vpop.f32.mrb[0].mxu0
      %v1399 = vpop.f32.mrb[0].mxu0
      %v1400 = vadd.f32 %v1272, %v1399
      %v1401 = vpop.f32.mrb[0].mxu0
      %1402 = vmatprep.mubr.bf16.mxu0 0
      %1403 = vmatmul.mubr.bf16.gmra.mrb[0].mxu0 %v1241
      %v1404 = vpop.f32.mrb[0].mxu0
      %v1405 = vadd.f32 %v1272, %v1404
      %v1406 = vpop.f32.mrb[0].mxu0
      %v1407 = vpop.f32.mrb[0].mxu0
      %v1408 = vadd.f32 %v1272, %v1407
      %v1409 = vpop.f32.mrb[0].mxu0
      %1410 = vmatprep.mubr.bf16.mxu0 0
      %1411 = vmatmul.mubr.bf16.gmra.mrb[0].mxu0 %v1242
      %v1412 = vpop.f32.mrb[0].mxu0
      %v1413 = vadd.f32 %v1272, %v1412
      %v1414 = vpop.f32.mrb[0].mxu0
      %v1415 = vpop.f32.mrb[0].mxu0
      %v1416 = vadd.f32 %v1272, %v1415
      %v1417 = vpop.f32.mrb[0].mxu0
      %1418 = vmatprep.mubr.bf16.mxu0 0
      %1419 = vmatmul.mubr.bf16.gmra.mrb[0].mxu0 %v1243
      %v1420 = vpop.f32.mrb[0].mxu0
      %v1421 = vadd.f32 %v1272, %v1420
      %v1422 = vpop.f32.mrb[0].mxu0
      %v1423 = vpop.f32.mrb[0].mxu0
      %v1424 = vadd.f32 %v1272, %v1423
      %v1425 = vpop.f32.mrb[0].mxu0
      %1426 = vmatprep.mubr.bf16.mxu0 0
      %1427 = vmatmul.mubr.bf16.gmra.mrb[0].mxu0 %v1244
      %v1428 = vpop.f32.mrb[0].mxu0
      %v1429 = vadd.f32 %v1272, %v1428
      %v1430 = vpop.f32.mrb[0].mxu0
      %v1431 = vpop.f32.mrb[0].mxu0
      %v1432 = vadd.f32 %v1272, %v1431
      %v1433 = vpop.f32.mrb[0].mxu0
      %1434 = vmatprep.mubr.bf16.mxu0 0
      %1435 = vmatmul.mubr.bf16.gmra.mrb[0].mxu0 %v1245
      %v1436 = vpop.f32.mrb[0].mxu0
      %v1437 = vadd.f32 %v1272, %v1436
      %v1438 = vpop.f32.mrb[0].mxu0
      %v1439 = vpop.f32.mrb[0].mxu0
      %v1440 = vadd.f32 %v1272, %v1439
      %v1441 = vpop.f32.mrb[0].mxu0
      %1442 = vmatprep.mubr.bf16.mxu0 0
      %1443 = vmatmul.mubr.bf16.gmra.mrb[0].mxu0 %v1246
      %v1444 = vpop.f32.mrb[0].mxu0
      %v1445 = vadd.f32 %v1272, %v1444
      %v1446 = vpop.f32.mrb[0].mxu0
      %v1447 = vpop.f32.mrb[0].mxu0
      %v1448 = vadd.f32 %v1272, %v1447
      %v1449 = vpop.f32.mrb[0].mxu0
      %1450 = vmatprep.mubr.bf16.mxu0 0
      %1451 = vmatmul.mubr.bf16.gmra.mrb[0].mxu0 %v1247
      %v1452 = vpop.f32.mrb[0].mxu0
      %v1453 = vadd.f32 %v1272, %v1452
      %v1454 = vpop.f32.mrb[0].mxu0
      %v1455 = vpop.f32.mrb[0].mxu0
      %v1456 = vadd.f32 %v1272, %v1455
      %v1457 = vpop.f32.mrb[0].mxu0
      %1458 = vmatprep.mubr.bf16.mxu0 0
      %1459 = vmatmul.mubr.bf16.gmra.mrb[0].mxu0 %v1248
      %v1460 = vpop.f32.mrb[0].mxu0
      %v1461 = vadd.f32 %v1272, %v1460
      %v1462 = vpop.f32.mrb[0].mxu0
      %v1463 = vpop.f32.mrb[0].mxu0
      %v1464 = vadd.f32 %v1272, %v1463
      %v1465 = vpop.f32.mrb[0].mxu0
      %1466 = vmatprep.mubr.bf16.mxu0 0
      %1467 = vmatmul.mubr.bf16.gmra.mrb[0].mxu0 %v1249
      %v1468 = vpop.f32.mrb[0].mxu0
      %v1469 = vadd.f32 %v1272, %v1468
      %v1470 = vpop.f32.mrb[0].mxu0
      %v1471 = vpop.f32.mrb[0].mxu0
      %v1472 = vadd.f32 %v1272, %v1471
      %v1473 = vpop.f32.mrb[0].mxu0
      %1474 = vmatprep.mubr.bf16.mxu0 0
      %1475 = vmatmul.mubr.bf16.gmra.mrb[0].mxu0 %v1250
      %v1476 = vpop.f32.mrb[0].mxu0
      %v1477 = vadd.f32 %v1272, %v1476
      %v1478 = vpop.f32.mrb[0].mxu0
      %v1479 = vpop.f32.mrb[0].mxu0
      %v1480 = vadd.f32 %v1272, %v1479
      %v1481 = vpop.f32.mrb[0].mxu0
      %1482 = vdwg.mxu0
      %vm1483 = vcmask 7168
      %1484 = vst.msk [vmem:[%s231] sm:$0xff] %vm1483, %v1357
      %1485 = vst.msk [vmem:[%s231 + $0x8] sm:$0xff] %vm1483, %v1360
      %1486 = vst.msk [vmem:[%s231 + $0x10] sm:$0xff] %vm1483, %v1365
      %1487 = vst.msk [vmem:[%s231 + $0x18] sm:$0xff] %vm1483, %v1368
      %1488 = vst.msk [vmem:[%s231 + $0x20] sm:$0xff] %vm1483, %v1373
      %1489 = vst.msk [vmem:[%s231 + $0x28] sm:$0xff] %vm1483, %v1376
      %1490 = vst.msk [vmem:[%s231 + $0x30] sm:$0xff] %vm1483, %v1381
      %1491 = vst.msk [vmem:[%s231 + $0x38] sm:$0xff] %vm1483, %v1384
      %1492 = vst.msk [vmem:[%s231 + $0x40] sm:$0xff] %vm1483, %v1389
      %1493 = vst.msk [vmem:[%s231 + $0x48] sm:$0xff] %vm1483, %v1392
      %1494 = vst.msk [vmem:[%s231 + $0x50] sm:$0xff] %vm1483, %v1397
      %1495 = vst.msk [vmem:[%s231 + $0x58] sm:$0xff] %vm1483, %v1400
      %1496 = vst.msk [vmem:[%s231 + $0x60] sm:$0xff] %vm1483, %v1405
      %1497 = vst.msk [vmem:[%s231 + $0x68] sm:$0xff] %vm1483, %v1408
      %1498 = vst.msk [vmem:[%s231 + $0x70] sm:$0xff] %vm1483, %v1413
      %1499 = vst.msk [vmem:[%s231 + $0x78] sm:$0xff] %vm1483, %v1416
      %1500 = vst.msk [vmem:[%s231 + $0x80] sm:$0xff] %vm1483, %v1421
      %1501 = vst.msk [vmem:[%s231 + $0x88] sm:$0xff] %vm1483, %v1424
      %1502 = vst.msk [vmem:[%s231 + $0x90] sm:$0xff] %vm1483, %v1429
      %1503 = vst.msk [vmem:[%s231 + $0x98] sm:$0xff] %vm1483, %v1432
      %1504 = vst.msk [vmem:[%s231 + $0xa0] sm:$0xff] %vm1483, %v1437
      %1505 = vst.msk [vmem:[%s231 + $0xa8] sm:$0xff] %vm1483, %v1440
      %1506 = vst.msk [vmem:[%s231 + $0xb0] sm:$0xff] %vm1483, %v1445
      %1507 = vst.msk [vmem:[%s231 + $0xb8] sm:$0xff] %vm1483, %v1448
      %1508 = vst.msk [vmem:[%s231 + $0xc0] sm:$0xff] %vm1483, %v1453
      %1509 = vst.msk [vmem:[%s231 + $0xc8] sm:$0xff] %vm1483, %v1456
      %1510 = vst.msk [vmem:[%s231 + $0xd0] sm:$0xff] %vm1483, %v1461
      %1511 = vst.msk [vmem:[%s231 + $0xd8] sm:$0xff] %vm1483, %v1464
      %1512 = vst.msk [vmem:[%s231 + $0xe0] sm:$0xff] %vm1483, %v1469
      %1513 = vst.msk [vmem:[%s231 + $0xe8] sm:$0xff] %vm1483, %v1472
      %1514 = vst.msk [vmem:[%s231 + $0xf0] sm:$0xff] %vm1483, %v1477
      %1515 = vst.msk [vmem:[%s231 + $0xf8] sm:$0xff] %vm1483, %v1480
      %s1516 = smul.u32 32, %s18
      %p1517 = scmp.lt.s32.totalorder %s1516, 63
      %s1518 = scalar_select %p1517, %s1516, 63
      %s1519 = smul.addr %s1518, 8
      %s1520 = scalar_lea.vmem %s5, %s1519
      // Predicated region
      $region41: #{mlp_forward.1} parent=39 // pred_check
        %p1521 = pneg %p146
      $region42: #{mlp_forward.1} parent=39 // pred_check_branch
        %1523 = sbr.rel (%p1521) target = $region44
      $region43: #{mlp_forward.1} parent=39 // pred_region
        %s1524 = smul.u32 32, %s18
      $region44: #{mlp_forward.1} parent=39 // pred_fallthru
        _
    $region40: #{mlp_forward.1} parent=5 // pred_fallthru
      _
    %p1525 = scmp.le.s32.totalorder 2, %s13
    // Predicated region
    $region45: #{mlp_forward.1} parent=5 // pred_check
      %p1526 = pneg %p1525
    $region46: #{mlp_forward.1} parent=5 // pred_check_branch
      %1528 = sbr.rel (%p1526) target = $region48
    $region47: #{mlp_forward.1} parent=5 // pred_region
      %s1529 = ssub.s32 %s13, 2
      // Predicated region
      $region49: #{mlp_forward.1} parent=47 // pred_check
        %p1530 = pneg %p152
      $region50: #{mlp_forward.1} parent=47 // pred_check_branch
        %1532 = sbr.rel (%p1530) target = $region52
      $region51: #{mlp_forward.1} parent=47 // pred_region
        %s1533 = smul.u32 32, %s19
        %p1534 = scmp.lt.s32.totalorder %s1533, 63
        %s1535 = scalar_select %p1534, %s1533, 63
        %s1536 = smul.addr %s1535, 8
        %s1537 = scalar_lea.vmem %s5, %s1536
      $region52: #{mlp_forward.1} parent=47 // pred_fallthru
        _
    $region48: #{mlp_forward.1} parent=5 // pred_fallthru
      _
  $region6: #{mlp_forward.1} parent=0 // loop_footer
    %s17 = sadd.s32 1, %s13
  $region7: #{mlp_forward.1} parent=0 // loop_footer_branch
    %12 = sbr.rel target = $region3
  $region8: #{mlp_forward.1} parent=0 // loop_exit
    _

</llo_original>
